<compile_context>
chip_gen: v7x
topology: tpu7x:2x2x1
jax: 0.10.0
libtpu: 0.0.40
codegen_flags: <defaults>
</compile_context>

<pallas_src>
import itertools
import math

import jax
import jax.numpy as jnp
from jax.experimental import pallas as pl
from jax.experimental.pallas import tpu as pltpu

EPS = 1e-8  # standard MVAE/MoPoE ProductOfExperts epsilon


def _round_up(x, m):
    return ((x + m - 1) // m) * m


def _poe_kernel(mask_ref, prior_ref, mu_ref, logvar_ref, mu_out_ref, lv_out_ref):
    """Product of experts for all K subsets on one batch tile.

    mask_ref  : SMEM [K*M] f32, 1.0 if modality m is in subset k (row-major k*M+m)
    prior_ref : SMEM [K]   f32, 1.0 if the standard-normal prior expert is added
    mu_ref / logvar_ref     : VMEM [M, tb, D]
    mu_out_ref / lv_out_ref : VMEM [K, tb, D]
    """
    M = mu_ref.shape[0]
    K = mu_out_ref.shape[0]

    # Prior expert: mu = 0, logvar = 0  ->  T = 1 / (exp(0) + eps + eps).
    prior_T = jnp.float32(1.0 / (1.0 + EPS + EPS))

    # Hoisted per-modality precision and precision-weighted mean: computed ONCE
    # per input tile instead of once per subset.
    Ts = []
    muTs = []
    for m in range(M):
        var = jnp.exp(logvar_ref[m]) + EPS                  # [tb, D]
        T = pl.reciprocal(var + EPS, approx=True)           # EUP vrcp
        Ts.append(T)
        muTs.append(mu_ref[m] * T)

    # Tiny static subset loop: only masked adds + one recip/log per subset.
    for k in range(K):
        w0 = mask_ref[k * M]
        sum_T = prior_ref[k] * prior_T + w0 * Ts[0]          # scalar prior add
        sum_muT = w0 * muTs[0]
        for m in range(1, M):
            w = mask_ref[k * M + m]
            sum_T = sum_T + w * Ts[m]
            sum_muT = sum_muT + w * muTs[m]
        pd_var = pl.reciprocal(sum_T, approx=True)
        mu_out_ref[k] = sum_muT * pd_var
        lv_out_ref[k] = jnp.log(pd_var + EPS)


def _choose_batch_tile(B, D, M, K, vmem_budget_bytes=32 * 1024 * 1024):
    """Pick a batch tile sized for ~32 MiB of VMEM (v7x-safe, roofline-sized)."""
    # f32 bytes per batch row per step: double-buffered inputs (2*2*M) +
    # double-buffered outputs (2*2*K) + hoisted T / mu*T live values (2*M).
    bytes_per_row = 4 * D * (6 * M + 4 * K)
    tb = vmem_budget_bytes // max(bytes_per_row, 1)
    tb = min(int(tb), 512, _round_up(B, 8))
    tb = max(8, (tb // 8) * 8)
    return tb


def poe_all_subsets(mask, prior, mus, logvars):
    """Run the PoE kernel for all K subsets, tiling over the batch axis."""
    K, M = mask.shape
    _, B, D = mus.shape

    # Lane-dense stores: pad D to a multiple of 128; batch tile multiple of 8.
    Dp = _round_up(D, 128)
    tb = _choose_batch_tile(B, Dp, M, K)
    Bp = _round_up(max(B, tb), tb)

    pad_b, pad_d = Bp - B, Dp - D
    if pad_b or pad_d:
        mus = jnp.pad(mus, ((0, 0), (0, pad_b), (0, pad_d)))
        logvars = jnp.pad(logvars, ((0, 0), (0, pad_b), (0, pad_d)))

    mask_flat = mask.reshape(-1)  # 1-D SMEM (avoids [K, M] -> [8, 128] padding)

    out_shape = (
        jax.ShapeDtypeStruct((K, Bp, Dp), jnp.float32),
        jax.ShapeDtypeStruct((K, Bp, Dp), jnp.float32),
    )
    mu_ps, lv_ps = pl.pallas_call(
        _poe_kernel,
        out_shape=out_shape,
        grid=(Bp // tb,),
        in_specs=[
            pl.BlockSpec(memory_space=pltpu.MemorySpace.SMEM),   # mask  [K*M]
            pl.BlockSpec(memory_space=pltpu.MemorySpace.SMEM),   # prior [K]
            pl.BlockSpec((M, tb, Dp), lambda b: (0, b, 0)),      # mus
            pl.BlockSpec((M, tb, Dp), lambda b: (0, b, 0)),      # logvars
        ],
        out_specs=(
            pl.BlockSpec((K, tb, Dp), lambda b: (0, b, 0)),
            pl.BlockSpec((K, tb, Dp), lambda b: (0, b, 0)),
        ),
        compiler_params=pltpu.CompilerParams(
            dimension_semantics=("parallel",),       # batch tiles split across TCs
            vmem_limit_bytes=48 * 1024 * 1024,
        ),
    )(mask_flat, prior, mus, logvars)

    if pad_b or pad_d:
        mu_ps = mu_ps[:, :B, :D]
        lv_ps = lv_ps[:, :B, :D]
    return mu_ps, lv_ps


def mixture_component_selection(mus, logvars):
    """Same contiguous-chunk selection as the PyTorch reference (static indices)."""
    K, B, _ = mus.shape
    w = 1.0 / float(K)
    idx_start, idx_end = [], []
    for k in range(K):
        i_start = 0 if k == 0 else int(idx_end[k - 1])
        i_end = B if k == K - 1 else i_start + int(math.floor(B * w))
        idx_start.append(i_start)
        idx_end.append(i_end)
    idx_end[-1] = B
    mu_sel = jnp.concatenate(
        [mus[k, idx_start[k]:idx_end[k], :] for k in range(K)], axis=0)
    lv_sel = jnp.concatenate(
        [logvars[k, idx_start[k]:idx_end[k], :] for k in range(K)], axis=0)
    return mu_sel, lv_sel


def mixture_of_product_of_experts_forward(encodings, subsets, modalities_str):
    """JAX/Pallas equivalent of MixtureOfProductOfExperts.forward.

    encodings: dict modality_name -> [mu, logvar], each [B, D]
    subsets:   dict subset_key -> list of modality indices
    """
    nb_mod = len(encodings)

    # Stack per-modality encodings: [M, B, D]
    mus = jnp.stack([encodings[m][0] for m in modalities_str], axis=0)
    logvars = jnp.stack([encodings[m][1] for m in modalities_str], axis=0)

    # Valid subsets (same filter as the reference), in dict insertion order.
    valid_keys = [k for k in subsets if max(subsets[k]) < nb_mod]

    mask_rows, prior_rows = [], []
    for s_key in valid_keys:
        row = [0.0] * nb_mod
        for mod_i in subsets[s_key]:
            row[mod_i] = 1.0
        mask_rows.append(row)
        prior_rows.append(1.0 if len(subsets[s_key]) == nb_mod else 0.0)
    mask = jnp.asarray(mask_rows, dtype=jnp.float32)     # [K, M]
    prior = jnp.asarray(prior_rows, dtype=jnp.float32)   # [K]

    # Hot path: PoE for every subset, computed in the Pallas kernel.
    mu_ps, lv_ps = poe_all_subsets(mask, prior, mus, logvars)

    powerset = {s_key: [mu_ps[i], lv_ps[i]] for i, s_key in enumerate(valid_keys)}

    # stack_posterior(powerset) == (mu_ps, lv_ps) in insertion order.
    mu_joint, logvar_joint = mixture_component_selection(mu_ps, lv_ps)

    return {"joint": [mu_joint, logvar_joint],
            "powerset": powerset,
            "individual": encodings}


if __name__ == "__main__":
    # Small deterministic example: M=3 modalities, B=8 samples, D=128 latent dim.
    key = jax.random.PRNGKey(0)
    M, B, D = 3, 8, 128
    modalities_str = ["m0", "m1", "m2"]

    keys = jax.random.split(key, 2 * M)
    encodings = {}
    for i, name in enumerate(modalities_str):
        mu = jax.random.normal(keys[2 * i], (B, D), dtype=jnp.float32)
        logvar = 0.1 * jax.random.normal(keys[2 * i + 1], (B, D), dtype=jnp.float32)
        encodings[name] = [mu, logvar]

    # Full non-empty powerset of modality indices.
    subsets = {}
    sid = 0
    for r in range(1, M + 1):
        for comb in itertools.combinations(range(M), r):
            subsets[f"s{sid}"] = list(comb)
            sid += 1

    out = mixture_of_product_of_experts_forward(encodings, subsets, modalities_str)
    jax.block_until_ready(out["joint"][0])
    jax.block_until_ready(out["joint"][1])
    print("KERNEL_OK")
</pallas_src>

<mosaic_0001>
module attributes {stable_mosaic.version = 11 : i64} {
  func.func @_poe_kernel(%arg0: i32, %arg1: memref<21xf32, #tpu.memory_space<smem>>, %arg2: memref<7xf32, #tpu.memory_space<smem>>, %arg3: memref<3x8x128xf32, #tpu.memory_space<vmem>>, %arg4: memref<3x8x128xf32, #tpu.memory_space<vmem>>, %arg5: memref<7x8x128xf32, #tpu.memory_space<vmem>>, %arg6: memref<7x8x128xf32, #tpu.memory_space<vmem>>) attributes {dimension_semantics = [#tpu.dimension_semantics<parallel>], iteration_bounds = array<i64: 1>, scalar_prefetch = 0 : i64, scratch_operands = 0 : i64, tpu.core_type = #tpu.core_type<tc>, window_params = [{transform_indices = @transform_0, window_bounds = array<i64: 21>}, {transform_indices = @transform_1, window_bounds = array<i64: 7>}, {transform_indices = @transform_2, window_bounds = array<i64: 3, 8, 128>}, {transform_indices = @transform_3, window_bounds = array<i64: 3, 8, 128>}, {transform_indices = @transform_4, window_bounds = array<i64: 7, 8, 128>}, {transform_indices = @transform_5, window_bounds = array<i64: 7, 8, 128>}]} {
    %c0 = arith.constant 0 : index
    %c0_0 = arith.constant 0 : index
    %c0_1 = arith.constant 0 : index
    %0 = vector.load %arg4[%c0, %c0_0, %c0_1] : memref<3x8x128xf32, #tpu.memory_space<vmem>>, vector<1x8x128xf32>
    %1 = vector.shape_cast %0 : vector<1x8x128xf32> to vector<8x128xf32>
    %2 = math.exp %1 : vector<8x128xf32>
    %cst = arith.constant 9.99999993E-9 : f32
    %3 = vector.broadcast %cst : f32 to vector<8x128xf32>
    %4 = arith.addf %2, %3 : vector<8x128xf32>
    %cst_2 = arith.constant 9.99999993E-9 : f32
    %5 = vector.broadcast %cst_2 : f32 to vector<8x128xf32>
    %6 = arith.addf %4, %5 : vector<8x128xf32>
    %7 = tpu.reciprocal %6 {approx = true} : vector<8x128xf32> -> vector<8x128xf32>
    %c0_3 = arith.constant 0 : index
    %c0_4 = arith.constant 0 : index
    %c0_5 = arith.constant 0 : index
    %8 = vector.load %arg3[%c0_3, %c0_4, %c0_5] : memref<3x8x128xf32, #tpu.memory_space<vmem>>, vector<1x8x128xf32>
    %9 = vector.shape_cast %8 : vector<1x8x128xf32> to vector<8x128xf32>
    %10 = arith.mulf %9, %7 : vector<8x128xf32>
    %c1 = arith.constant 1 : index
    %c0_6 = arith.constant 0 : index
    %c0_7 = arith.constant 0 : index
    %11 = vector.load %arg4[%c1, %c0_6, %c0_7] : memref<3x8x128xf32, #tpu.memory_space<vmem>>, vector<1x8x128xf32>
    %12 = vector.shape_cast %11 : vector<1x8x128xf32> to vector<8x128xf32>
    %13 = math.exp %12 : vector<8x128xf32>
    %cst_8 = arith.constant 9.99999993E-9 : f32
    %14 = vector.broadcast %cst_8 : f32 to vector<8x128xf32>
    %15 = arith.addf %13, %14 : vector<8x128xf32>
    %cst_9 = arith.constant 9.99999993E-9 : f32
    %16 = vector.broadcast %cst_9 : f32 to vector<8x128xf32>
    %17 = arith.addf %15, %16 : vector<8x128xf32>
    %18 = tpu.reciprocal %17 {approx = true} : vector<8x128xf32> -> vector<8x128xf32>
    %c1_10 = arith.constant 1 : index
    %c0_11 = arith.constant 0 : index
    %c0_12 = arith.constant 0 : index
    %19 = vector.load %arg3[%c1_10, %c0_11, %c0_12] : memref<3x8x128xf32, #tpu.memory_space<vmem>>, vector<1x8x128xf32>
    %20 = vector.shape_cast %19 : vector<1x8x128xf32> to vector<8x128xf32>
    %21 = arith.mulf %20, %18 : vector<8x128xf32>
    %c2 = arith.constant 2 : index
    %c0_13 = arith.constant 0 : index
    %c0_14 = arith.constant 0 : index
    %22 = vector.load %arg4[%c2, %c0_13, %c0_14] : memref<3x8x128xf32, #tpu.memory_space<vmem>>, vector<1x8x128xf32>
    %23 = vector.shape_cast %22 : vector<1x8x128xf32> to vector<8x128xf32>
    %24 = math.exp %23 : vector<8x128xf32>
    %cst_15 = arith.constant 9.99999993E-9 : f32
    %25 = vector.broadcast %cst_15 : f32 to vector<8x128xf32>
    %26 = arith.addf %24, %25 : vector<8x128xf32>
    %cst_16 = arith.constant 9.99999993E-9 : f32
    %27 = vector.broadcast %cst_16 : f32 to vector<8x128xf32>
    %28 = arith.addf %26, %27 : vector<8x128xf32>
    %29 = tpu.reciprocal %28 {approx = true} : vector<8x128xf32> -> vector<8x128xf32>
    %c2_17 = arith.constant 2 : index
    %c0_18 = arith.constant 0 : index
    %c0_19 = arith.constant 0 : index
    %30 = vector.load %arg3[%c2_17, %c0_18, %c0_19] : memref<3x8x128xf32, #tpu.memory_space<vmem>>, vector<1x8x128xf32>
    %31 = vector.shape_cast %30 : vector<1x8x128xf32> to vector<8x128xf32>
    %32 = arith.mulf %31, %29 : vector<8x128xf32>
    %c0_20 = arith.constant 0 : index
    %33 = memref.load %arg1[%c0_20] : memref<21xf32, #tpu.memory_space<smem>>
    %c0_21 = arith.constant 0 : index
    %34 = memref.load %arg2[%c0_21] : memref<7xf32, #tpu.memory_space<smem>>
    %cst_22 = arith.constant 1.000000e+00 : f32
    %35 = arith.mulf %34, %cst_22 : f32
    %36 = vector.broadcast %33 : f32 to vector<8x128xf32>
    %37 = arith.mulf %36, %7 : vector<8x128xf32>
    %38 = vector.broadcast %35 : f32 to vector<8x128xf32>
    %39 = arith.addf %38, %37 : vector<8x128xf32>
    %40 = vector.broadcast %33 : f32 to vector<8x128xf32>
    %41 = arith.mulf %40, %10 : vector<8x128xf32>
    %c1_23 = arith.constant 1 : index
    %42 = memref.load %arg1[%c1_23] : memref<21xf32, #tpu.memory_space<smem>>
    %43 = vector.broadcast %42 : f32 to vector<8x128xf32>
    %44 = arith.mulf %43, %18 : vector<8x128xf32>
    %45 = arith.addf %39, %44 : vector<8x128xf32>
    %46 = vector.broadcast %42 : f32 to vector<8x128xf32>
    %47 = arith.mulf %46, %21 : vector<8x128xf32>
    %48 = arith.addf %41, %47 : vector<8x128xf32>
    %c2_24 = arith.constant 2 : index
    %49 = memref.load %arg1[%c2_24] : memref<21xf32, #tpu.memory_space<smem>>
    %50 = vector.broadcast %49 : f32 to vector<8x128xf32>
    %51 = arith.mulf %50, %29 : vector<8x128xf32>
    %52 = arith.addf %45, %51 : vector<8x128xf32>
    %53 = vector.broadcast %49 : f32 to vector<8x128xf32>
    %54 = arith.mulf %53, %32 : vector<8x128xf32>
    %55 = arith.addf %48, %54 : vector<8x128xf32>
    %56 = tpu.reciprocal %52 {approx = true} : vector<8x128xf32> -> vector<8x128xf32>
    %57 = arith.mulf %55, %56 : vector<8x128xf32>
    %c0_25 = arith.constant 0 : index
    %c0_26 = arith.constant 0 : index
    %c0_27 = arith.constant 0 : index
    %58 = vector.load %arg5[%c0_25, %c0_26, %c0_27] : memref<7x8x128xf32, #tpu.memory_space<vmem>>, vector<1x8x128xf32>
    %59 = vector.shape_cast %58 : vector<1x8x128xf32> to vector<8x128xf32>
    %60 = vector.shape_cast %57 : vector<8x128xf32> to vector<1x8x128xf32>
    tpu.vector_store %arg5[%c0_25, %c0_26, %c0_27], %60 {strides = array<i32>} : memref<7x8x128xf32, #tpu.memory_space<vmem>>, vector<1x8x128xf32>,
    %cst_28 = arith.constant 9.99999993E-9 : f32
    %61 = vector.broadcast %cst_28 : f32 to vector<8x128xf32>
    %62 = arith.addf %56, %61 : vector<8x128xf32>
    %63 = math.log %62 : vector<8x128xf32>
    %c0_29 = arith.constant 0 : index
    %c0_30 = arith.constant 0 : index
    %c0_31 = arith.constant 0 : index
    %64 = vector.load %arg6[%c0_29, %c0_30, %c0_31] : memref<7x8x128xf32, #tpu.memory_space<vmem>>, vector<1x8x128xf32>
    %65 = vector.shape_cast %64 : vector<1x8x128xf32> to vector<8x128xf32>
    %66 = vector.shape_cast %63 : vector<8x128xf32> to vector<1x8x128xf32>
    tpu.vector_store %arg6[%c0_29, %c0_30, %c0_31], %66 {strides = array<i32>} : memref<7x8x128xf32, #tpu.memory_space<vmem>>, vector<1x8x128xf32>,
    %c3 = arith.constant 3 : index
    %67 = memref.load %arg1[%c3] : memref<21xf32, #tpu.memory_space<smem>>
    %c1_32 = arith.constant 1 : index
    %68 = memref.load %arg2[%c1_32] : memref<7xf32, #tpu.memory_space<smem>>
    %cst_33 = arith.constant 1.000000e+00 : f32
    %69 = arith.mulf %68, %cst_33 : f32
    %70 = vector.broadcast %67 : f32 to vector<8x128xf32>
    %71 = arith.mulf %70, %7 : vector<8x128xf32>
    %72 = vector.broadcast %69 : f32 to vector<8x128xf32>
    %73 = arith.addf %72, %71 : vector<8x128xf32>
    %74 = vector.broadcast %67 : f32 to vector<8x128xf32>
    %75 = arith.mulf %74, %10 : vector<8x128xf32>
    %c4 = arith.constant 4 : index
    %76 = memref.load %arg1[%c4] : memref<21xf32, #tpu.memory_space<smem>>
    %77 = vector.broadcast %76 : f32 to vector<8x128xf32>
    %78 = arith.mulf %77, %18 : vector<8x128xf32>
    %79 = arith.addf %73, %78 : vector<8x128xf32>
    %80 = vector.broadcast %76 : f32 to vector<8x128xf32>
    %81 = arith.mulf %80, %21 : vector<8x128xf32>
    %82 = arith.addf %75, %81 : vector<8x128xf32>
    %c5 = arith.constant 5 : index
    %83 = memref.load %arg1[%c5] : memref<21xf32, #tpu.memory_space<smem>>
    %84 = vector.broadcast %83 : f32 to vector<8x128xf32>
    %85 = arith.mulf %84, %29 : vector<8x128xf32>
    %86 = arith.addf %79, %85 : vector<8x128xf32>
    %87 = vector.broadcast %83 : f32 to vector<8x128xf32>
    %88 = arith.mulf %87, %32 : vector<8x128xf32>
    %89 = arith.addf %82, %88 : vector<8x128xf32>
    %90 = tpu.reciprocal %86 {approx = true} : vector<8x128xf32> -> vector<8x128xf32>
    %91 = arith.mulf %89, %90 : vector<8x128xf32>
    %c1_34 = arith.constant 1 : index
    %c0_35 = arith.constant 0 : index
    %c0_36 = arith.constant 0 : index
    %92 = vector.load %arg5[%c1_34, %c0_35, %c0_36] : memref<7x8x128xf32, #tpu.memory_space<vmem>>, vector<1x8x128xf32>
    %93 = vector.shape_cast %92 : vector<1x8x128xf32> to vector<8x128xf32>
    %94 = vector.shape_cast %91 : vector<8x128xf32> to vector<1x8x128xf32>
    tpu.vector_store %arg5[%c1_34, %c0_35, %c0_36], %94 {strides = array<i32>} : memref<7x8x128xf32, #tpu.memory_space<vmem>>, vector<1x8x128xf32>,
    %cst_37 = arith.constant 9.99999993E-9 : f32
    %95 = vector.broadcast %cst_37 : f32 to vector<8x128xf32>
    %96 = arith.addf %90, %95 : vector<8x128xf32>
    %97 = math.log %96 : vector<8x128xf32>
    %c1_38 = arith.constant 1 : index
    %c0_39 = arith.constant 0 : index
    %c0_40 = arith.constant 0 : index
    %98 = vector.load %arg6[%c1_38, %c0_39, %c0_40] : memref<7x8x128xf32, #tpu.memory_space<vmem>>, vector<1x8x128xf32>
    %99 = vector.shape_cast %98 : vector<1x8x128xf32> to vector<8x128xf32>
    %100 = vector.shape_cast %97 : vector<8x128xf32> to vector<1x8x128xf32>
    tpu.vector_store %arg6[%c1_38, %c0_39, %c0_40], %100 {strides = array<i32>} : memref<7x8x128xf32, #tpu.memory_space<vmem>>, vector<1x8x128xf32>,
    %c6 = arith.constant 6 : index
    %101 = memref.load %arg1[%c6] : memref<21xf32, #tpu.memory_space<smem>>
    %c2_41 = arith.constant 2 : index
    %102 = memref.load %arg2[%c2_41] : memref<7xf32, #tpu.memory_space<smem>>
    %cst_42 = arith.constant 1.000000e+00 : f32
    %103 = arith.mulf %102, %cst_42 : f32
    %104 = vector.broadcast %101 : f32 to vector<8x128xf32>
    %105 = arith.mulf %104, %7 : vector<8x128xf32>
    %106 = vector.broadcast %103 : f32 to vector<8x128xf32>
    %107 = arith.addf %106, %105 : vector<8x128xf32>
    %108 = vector.broadcast %101 : f32 to vector<8x128xf32>
    %109 = arith.mulf %108, %10 : vector<8x128xf32>
    %c7 = arith.constant 7 : index
    %110 = memref.load %arg1[%c7] : memref<21xf32, #tpu.memory_space<smem>>
    %111 = vector.broadcast %110 : f32 to vector<8x128xf32>
    %112 = arith.mulf %111, %18 : vector<8x128xf32>
    %113 = arith.addf %107, %112 : vector<8x128xf32>
    %114 = vector.broadcast %110 : f32 to vector<8x128xf32>
    %115 = arith.mulf %114, %21 : vector<8x128xf32>
    %116 = arith.addf %109, %115 : vector<8x128xf32>
    %c8 = arith.constant 8 : index
    %117 = memref.load %arg1[%c8] : memref<21xf32, #tpu.memory_space<smem>>
    %118 = vector.broadcast %117 : f32 to vector<8x128xf32>
    %119 = arith.mulf %118, %29 : vector<8x128xf32>
    %120 = arith.addf %113, %119 : vector<8x128xf32>
    %121 = vector.broadcast %117 : f32 to vector<8x128xf32>
    %122 = arith.mulf %121, %32 : vector<8x128xf32>
    %123 = arith.addf %116, %122 : vector<8x128xf32>
    %124 = tpu.reciprocal %120 {approx = true} : vector<8x128xf32> -> vector<8x128xf32>
    %125 = arith.mulf %123, %124 : vector<8x128xf32>
    %c2_43 = arith.constant 2 : index
    %c0_44 = arith.constant 0 : index
    %c0_45 = arith.constant 0 : index
    %126 = vector.load %arg5[%c2_43, %c0_44, %c0_45] : memref<7x8x128xf32, #tpu.memory_space<vmem>>, vector<1x8x128xf32>
    %127 = vector.shape_cast %126 : vector<1x8x128xf32> to vector<8x128xf32>
    %128 = vector.shape_cast %125 : vector<8x128xf32> to vector<1x8x128xf32>
    tpu.vector_store %arg5[%c2_43, %c0_44, %c0_45], %128 {strides = array<i32>} : memref<7x8x128xf32, #tpu.memory_space<vmem>>, vector<1x8x128xf32>,
    %cst_46 = arith.constant 9.99999993E-9 : f32
    %129 = vector.broadcast %cst_46 : f32 to vector<8x128xf32>
    %130 = arith.addf %124, %129 : vector<8x128xf32>
    %131 = math.log %130 : vector<8x128xf32>
    %c2_47 = arith.constant 2 : index
    %c0_48 = arith.constant 0 : index
    %c0_49 = arith.constant 0 : index
    %132 = vector.load %arg6[%c2_47, %c0_48, %c0_49] : memref<7x8x128xf32, #tpu.memory_space<vmem>>, vector<1x8x128xf32>
    %133 = vector.shape_cast %132 : vector<1x8x128xf32> to vector<8x128xf32>
    %134 = vector.shape_cast %131 : vector<8x128xf32> to vector<1x8x128xf32>
    tpu.vector_store %arg6[%c2_47, %c0_48, %c0_49], %134 {strides = array<i32>} : memref<7x8x128xf32, #tpu.memory_space<vmem>>, vector<1x8x128xf32>,
    %c9 = arith.constant 9 : index
    %135 = memref.load %arg1[%c9] : memref<21xf32, #tpu.memory_space<smem>>
    %c3_50 = arith.constant 3 : index
    %136 = memref.load %arg2[%c3_50] : memref<7xf32, #tpu.memory_space<smem>>
    %cst_51 = arith.constant 1.000000e+00 : f32
    %137 = arith.mulf %136, %cst_51 : f32
    %138 = vector.broadcast %135 : f32 to vector<8x128xf32>
    %139 = arith.mulf %138, %7 : vector<8x128xf32>
    %140 = vector.broadcast %137 : f32 to vector<8x128xf32>
    %141 = arith.addf %140, %139 : vector<8x128xf32>
    %142 = vector.broadcast %135 : f32 to vector<8x128xf32>
    %143 = arith.mulf %142, %10 : vector<8x128xf32>
    %c10 = arith.constant 10 : index
    %144 = memref.load %arg1[%c10] : memref<21xf32, #tpu.memory_space<smem>>
    %145 = vector.broadcast %144 : f32 to vector<8x128xf32>
    %146 = arith.mulf %145, %18 : vector<8x128xf32>
    %147 = arith.addf %141, %146 : vector<8x128xf32>
    %148 = vector.broadcast %144 : f32 to vector<8x128xf32>
    %149 = arith.mulf %148, %21 : vector<8x128xf32>
    %150 = arith.addf %143, %149 : vector<8x128xf32>
    %c11 = arith.constant 11 : index
    %151 = memref.load %arg1[%c11] : memref<21xf32, #tpu.memory_space<smem>>
    %152 = vector.broadcast %151 : f32 to vector<8x128xf32>
    %153 = arith.mulf %152, %29 : vector<8x128xf32>
    %154 = arith.addf %147, %153 : vector<8x128xf32>
    %155 = vector.broadcast %151 : f32 to vector<8x128xf32>
    %156 = arith.mulf %155, %32 : vector<8x128xf32>
    %157 = arith.addf %150, %156 : vector<8x128xf32>
    %158 = tpu.reciprocal %154 {approx = true} : vector<8x128xf32> -> vector<8x128xf32>
    %159 = arith.mulf %157, %158 : vector<8x128xf32>
    %c3_52 = arith.constant 3 : index
    %c0_53 = arith.constant 0 : index
    %c0_54 = arith.constant 0 : index
    %160 = vector.load %arg5[%c3_52, %c0_53, %c0_54] : memref<7x8x128xf32, #tpu.memory_space<vmem>>, vector<1x8x128xf32>
    %161 = vector.shape_cast %160 : vector<1x8x128xf32> to vector<8x128xf32>
    %162 = vector.shape_cast %159 : vector<8x128xf32> to vector<1x8x128xf32>
    tpu.vector_store %arg5[%c3_52, %c0_53, %c0_54], %162 {strides = array<i32>} : memref<7x8x128xf32, #tpu.memory_space<vmem>>, vector<1x8x128xf32>,
    %cst_55 = arith.constant 9.99999993E-9 : f32
    %163 = vector.broadcast %cst_55 : f32 to vector<8x128xf32>
    %164 = arith.addf %158, %163 : vector<8x128xf32>
    %165 = math.log %164 : vector<8x128xf32>
    %c3_56 = arith.constant 3 : index
    %c0_57 = arith.constant 0 : index
    %c0_58 = arith.constant 0 : index
    %166 = vector.load %arg6[%c3_56, %c0_57, %c0_58] : memref<7x8x128xf32, #tpu.memory_space<vmem>>, vector<1x8x128xf32>
    %167 = vector.shape_cast %166 : vector<1x8x128xf32> to vector<8x128xf32>
    %168 = vector.shape_cast %165 : vector<8x128xf32> to vector<1x8x128xf32>
    tpu.vector_store %arg6[%c3_56, %c0_57, %c0_58], %168 {strides = array<i32>} : memref<7x8x128xf32, #tpu.memory_space<vmem>>, vector<1x8x128xf32>,
    %c12 = arith.constant 12 : index
    %169 = memref.load %arg1[%c12] : memref<21xf32, #tpu.memory_space<smem>>
    %c4_59 = arith.constant 4 : index
    %170 = memref.load %arg2[%c4_59] : memref<7xf32, #tpu.memory_space<smem>>
    %cst_60 = arith.constant 1.000000e+00 : f32
    %171 = arith.mulf %170, %cst_60 : f32
    %172 = vector.broadcast %169 : f32 to vector<8x128xf32>
    %173 = arith.mulf %172, %7 : vector<8x128xf32>
    %174 = vector.broadcast %171 : f32 to vector<8x128xf32>
    %175 = arith.addf %174, %173 : vector<8x128xf32>
    %176 = vector.broadcast %169 : f32 to vector<8x128xf32>
    %177 = arith.mulf %176, %10 : vector<8x128xf32>
    %c13 = arith.constant 13 : index
    %178 = memref.load %arg1[%c13] : memref<21xf32, #tpu.memory_space<smem>>
    %179 = vector.broadcast %178 : f32 to vector<8x128xf32>
    %180 = arith.mulf %179, %18 : vector<8x128xf32>
    %181 = arith.addf %175, %180 : vector<8x128xf32>
    %182 = vector.broadcast %178 : f32 to vector<8x128xf32>
    %183 = arith.mulf %182, %21 : vector<8x128xf32>
    %184 = arith.addf %177, %183 : vector<8x128xf32>
    %c14 = arith.constant 14 : index
    %185 = memref.load %arg1[%c14] : memref<21xf32, #tpu.memory_space<smem>>
    %186 = vector.broadcast %185 : f32 to vector<8x128xf32>
    %187 = arith.mulf %186, %29 : vector<8x128xf32>
    %188 = arith.addf %181, %187 : vector<8x128xf32>
    %189 = vector.broadcast %185 : f32 to vector<8x128xf32>
    %190 = arith.mulf %189, %32 : vector<8x128xf32>
    %191 = arith.addf %184, %190 : vector<8x128xf32>
    %192 = tpu.reciprocal %188 {approx = true} : vector<8x128xf32> -> vector<8x128xf32>
    %193 = arith.mulf %191, %192 : vector<8x128xf32>
    %c4_61 = arith.constant 4 : index
    %c0_62 = arith.constant 0 : index
    %c0_63 = arith.constant 0 : index
    %194 = vector.load %arg5[%c4_61, %c0_62, %c0_63] : memref<7x8x128xf32, #tpu.memory_space<vmem>>, vector<1x8x128xf32>
    %195 = vector.shape_cast %194 : vector<1x8x128xf32> to vector<8x128xf32>
    %196 = vector.shape_cast %193 : vector<8x128xf32> to vector<1x8x128xf32>
    tpu.vector_store %arg5[%c4_61, %c0_62, %c0_63], %196 {strides = array<i32>} : memref<7x8x128xf32, #tpu.memory_space<vmem>>, vector<1x8x128xf32>,
    %cst_64 = arith.constant 9.99999993E-9 : f32
    %197 = vector.broadcast %cst_64 : f32 to vector<8x128xf32>
    %198 = arith.addf %192, %197 : vector<8x128xf32>
    %199 = math.log %198 : vector<8x128xf32>
    %c4_65 = arith.constant 4 : index
    %c0_66 = arith.constant 0 : index
    %c0_67 = arith.constant 0 : index
    %200 = vector.load %arg6[%c4_65, %c0_66, %c0_67] : memref<7x8x128xf32, #tpu.memory_space<vmem>>, vector<1x8x128xf32>
    %201 = vector.shape_cast %200 : vector<1x8x128xf32> to vector<8x128xf32>
    %202 = vector.shape_cast %199 : vector<8x128xf32> to vector<1x8x128xf32>
    tpu.vector_store %arg6[%c4_65, %c0_66, %c0_67], %202 {strides = array<i32>} : memref<7x8x128xf32, #tpu.memory_space<vmem>>, vector<1x8x128xf32>,
    %c15 = arith.constant 15 : index
    %203 = memref.load %arg1[%c15] : memref<21xf32, #tpu.memory_space<smem>>
    %c5_68 = arith.constant 5 : index
    %204 = memref.load %arg2[%c5_68] : memref<7xf32, #tpu.memory_space<smem>>
    %cst_69 = arith.constant 1.000000e+00 : f32
    %205 = arith.mulf %204, %cst_69 : f32
    %206 = vector.broadcast %203 : f32 to vector<8x128xf32>
    %207 = arith.mulf %206, %7 : vector<8x128xf32>
    %208 = vector.broadcast %205 : f32 to vector<8x128xf32>
    %209 = arith.addf %208, %207 : vector<8x128xf32>
    %210 = vector.broadcast %203 : f32 to vector<8x128xf32>
    %211 = arith.mulf %210, %10 : vector<8x128xf32>
    %c16 = arith.constant 16 : index
    %212 = memref.load %arg1[%c16] : memref<21xf32, #tpu.memory_space<smem>>
    %213 = vector.broadcast %212 : f32 to vector<8x128xf32>
    %214 = arith.mulf %213, %18 : vector<8x128xf32>
    %215 = arith.addf %209, %214 : vector<8x128xf32>
    %216 = vector.broadcast %212 : f32 to vector<8x128xf32>
    %217 = arith.mulf %216, %21 : vector<8x128xf32>
    %218 = arith.addf %211, %217 : vector<8x128xf32>
    %c17 = arith.constant 17 : index
    %219 = memref.load %arg1[%c17] : memref<21xf32, #tpu.memory_space<smem>>
    %220 = vector.broadcast %219 : f32 to vector<8x128xf32>
    %221 = arith.mulf %220, %29 : vector<8x128xf32>
    %222 = arith.addf %215, %221 : vector<8x128xf32>
    %223 = vector.broadcast %219 : f32 to vector<8x128xf32>
    %224 = arith.mulf %223, %32 : vector<8x128xf32>
    %225 = arith.addf %218, %224 : vector<8x128xf32>
    %226 = tpu.reciprocal %222 {approx = true} : vector<8x128xf32> -> vector<8x128xf32>
    %227 = arith.mulf %225, %226 : vector<8x128xf32>
    %c5_70 = arith.constant 5 : index
    %c0_71 = arith.constant 0 : index
    %c0_72 = arith.constant 0 : index
    %228 = vector.load %arg5[%c5_70, %c0_71, %c0_72] : memref<7x8x128xf32, #tpu.memory_space<vmem>>, vector<1x8x128xf32>
    %229 = vector.shape_cast %228 : vector<1x8x128xf32> to vector<8x128xf32>
    %230 = vector.shape_cast %227 : vector<8x128xf32> to vector<1x8x128xf32>
    tpu.vector_store %arg5[%c5_70, %c0_71, %c0_72], %230 {strides = array<i32>} : memref<7x8x128xf32, #tpu.memory_space<vmem>>, vector<1x8x128xf32>,
    %cst_73 = arith.constant 9.99999993E-9 : f32
    %231 = vector.broadcast %cst_73 : f32 to vector<8x128xf32>
    %232 = arith.addf %226, %231 : vector<8x128xf32>
    %233 = math.log %232 : vector<8x128xf32>
    %c5_74 = arith.constant 5 : index
    %c0_75 = arith.constant 0 : index
    %c0_76 = arith.constant 0 : index
    %234 = vector.load %arg6[%c5_74, %c0_75, %c0_76] : memref<7x8x128xf32, #tpu.memory_space<vmem>>, vector<1x8x128xf32>
    %235 = vector.shape_cast %234 : vector<1x8x128xf32> to vector<8x128xf32>
    %236 = vector.shape_cast %233 : vector<8x128xf32> to vector<1x8x128xf32>
    tpu.vector_store %arg6[%c5_74, %c0_75, %c0_76], %236 {strides = array<i32>} : memref<7x8x128xf32, #tpu.memory_space<vmem>>, vector<1x8x128xf32>,
    %c18 = arith.constant 18 : index
    %237 = memref.load %arg1[%c18] : memref<21xf32, #tpu.memory_space<smem>>
    %c6_77 = arith.constant 6 : index
    %238 = memref.load %arg2[%c6_77] : memref<7xf32, #tpu.memory_space<smem>>
    %cst_78 = arith.constant 1.000000e+00 : f32
    %239 = arith.mulf %238, %cst_78 : f32
    %240 = vector.broadcast %237 : f32 to vector<8x128xf32>
    %241 = arith.mulf %240, %7 : vector<8x128xf32>
    %242 = vector.broadcast %239 : f32 to vector<8x128xf32>
    %243 = arith.addf %242, %241 : vector<8x128xf32>
    %244 = vector.broadcast %237 : f32 to vector<8x128xf32>
    %245 = arith.mulf %244, %10 : vector<8x128xf32>
    %c19 = arith.constant 19 : index
    %246 = memref.load %arg1[%c19] : memref<21xf32, #tpu.memory_space<smem>>
    %247 = vector.broadcast %246 : f32 to vector<8x128xf32>
    %248 = arith.mulf %247, %18 : vector<8x128xf32>
    %249 = arith.addf %243, %248 : vector<8x128xf32>
    %250 = vector.broadcast %246 : f32 to vector<8x128xf32>
    %251 = arith.mulf %250, %21 : vector<8x128xf32>
    %252 = arith.addf %245, %251 : vector<8x128xf32>
    %c20 = arith.constant 20 : index
    %253 = memref.load %arg1[%c20] : memref<21xf32, #tpu.memory_space<smem>>
    %254 = vector.broadcast %253 : f32 to vector<8x128xf32>
    %255 = arith.mulf %254, %29 : vector<8x128xf32>
    %256 = arith.addf %249, %255 : vector<8x128xf32>
    %257 = vector.broadcast %253 : f32 to vector<8x128xf32>
    %258 = arith.mulf %257, %32 : vector<8x128xf32>
    %259 = arith.addf %252, %258 : vector<8x128xf32>
    %260 = tpu.reciprocal %256 {approx = true} : vector<8x128xf32> -> vector<8x128xf32>
    %261 = arith.mulf %259, %260 : vector<8x128xf32>
    %c6_79 = arith.constant 6 : index
    %c0_80 = arith.constant 0 : index
    %c0_81 = arith.constant 0 : index
    %262 = vector.load %arg5[%c6_79, %c0_80, %c0_81] : memref<7x8x128xf32, #tpu.memory_space<vmem>>, vector<1x8x128xf32>
    %263 = vector.shape_cast %262 : vector<1x8x128xf32> to vector<8x128xf32>
    %264 = vector.shape_cast %261 : vector<8x128xf32> to vector<1x8x128xf32>
    tpu.vector_store %arg5[%c6_79, %c0_80, %c0_81], %264 {strides = array<i32>} : memref<7x8x128xf32, #tpu.memory_space<vmem>>, vector<1x8x128xf32>,
    %cst_82 = arith.constant 9.99999993E-9 : f32
    %265 = vector.broadcast %cst_82 : f32 to vector<8x128xf32>
    %266 = arith.addf %260, %265 : vector<8x128xf32>
    %267 = math.log %266 : vector<8x128xf32>
    %c6_83 = arith.constant 6 : index
    %c0_84 = arith.constant 0 : index
    %c0_85 = arith.constant 0 : index
    %268 = vector.load %arg6[%c6_83, %c0_84, %c0_85] : memref<7x8x128xf32, #tpu.memory_space<vmem>>, vector<1x8x128xf32>
    %269 = vector.shape_cast %268 : vector<1x8x128xf32> to vector<8x128xf32>
    %270 = vector.shape_cast %267 : vector<8x128xf32> to vector<1x8x128xf32>
    tpu.vector_store %arg6[%c6_83, %c0_84, %c0_85], %270 {strides = array<i32>} : memref<7x8x128xf32, #tpu.memory_space<vmem>>, vector<1x8x128xf32>,
    return
  }
  func.func @transform_0(%arg0: i32) -> i32 {
    %c0_i32 = arith.constant 0 : i32
    %c0_i32_0 = arith.constant 0 : i32
    return %c0_i32 : i32
  }
  func.func @transform_1(%arg0: i32) -> i32 {
    %c0_i32 = arith.constant 0 : i32
    %c0_i32_0 = arith.constant 0 : i32
    return %c0_i32 : i32
  }
  func.func @transform_2(%arg0: i32) -> (i32, i32, i32) {
    %c0_i32 = arith.constant 0 : i32
    %c0_i32_0 = arith.constant 0 : i32
    %c0_i32_1 = arith.constant 0 : i32
    return %c0_i32, %arg0, %c0_i32_0 : i32, i32, i32
  }
  func.func @transform_3(%arg0: i32) -> (i32, i32, i32) {
    %c0_i32 = arith.constant 0 : i32
    %c0_i32_0 = arith.constant 0 : i32
    %c0_i32_1 = arith.constant 0 : i32
    return %c0_i32, %arg0, %c0_i32_0 : i32, i32, i32
  }
  func.func @transform_4(%arg0: i32) -> (i32, i32, i32) {
    %c0_i32 = arith.constant 0 : i32
    %c0_i32_0 = arith.constant 0 : i32
    %c0_i32_1 = arith.constant 0 : i32
    return %c0_i32, %arg0, %c0_i32_0 : i32, i32, i32
  }
  func.func @transform_5(%arg0: i32) -> (i32, i32, i32) {
    %c0_i32 = arith.constant 0 : i32
    %c0_i32_0 = arith.constant 0 : i32
    %c0_i32_1 = arith.constant 0 : i32
    return %c0_i32, %arg0, %c0_i32_0 : i32, i32, i32
  }
}

</mosaic_0001>

<llo_original>
// kernel: tpu_custom_call.1
$region0: #{tpu_custom_call.1}
  #allocation0 [shape = 'u32[]', space=smem, size = 0x4, offset = 0x4, fixed_abs, tag = 'smem constant byte address 0x4 - core index']
  #allocation1 [shape = 'u32[144,128]{1,0:T(1,128)}', space=vmem, size = 0x12000, scoped, tag = 'internal scratch']
  %s0 = inlined_call_operand.hbm [shape: f32[21], index: 0, kind: input, shape index: {}]
  %s1 = inlined_call_operand.vmem [shape: f32[7], index: 1, kind: input, shape index: {}]
  %s2 = inlined_call_operand.hbm [shape: f32[3,8,128], index: 2, kind: input, shape index: {}]
  %s3 = inlined_call_operand.hbm [shape: f32[3,8,128], index: 3, kind: input, shape index: {}]
  %s4 = inlined_call_operand.hbm [shape: f32[7,8,128], index: 4, kind: output, shape index: {0}]
  %s5 = inlined_call_operand.hbm [shape: f32[7,8,128], index: 5, kind: output, shape index: {1}]
  %6 = xla_tuple %s4, %s5
  %s7 = sld [smem:[#allocation0]]
  $region50: #{tpu_custom_call.1} parent=0
    _
  %s9 = ssub.s32 1, %s7
  %s10 = scalar_select 0, %s9, %s7
  $region1: #{tpu_custom_call.1} parent=0
    #allocation2 [shape = 'u8[512]{0}', space=smem, size = 0x200, scoped, tag = 'input window, operand 0, single buffered']
    #allocation3 [shape = 's32[1]{0}', space=sflag, size = 0x4, scoped, tag = 'scoped memory for tpu_custom_call.1']
    #allocation4 [shape = 's32[1]{0}', space=sflag, size = 0x4, scoped, tag = 'scoped memory for tpu_custom_call.1']
    #allocation5 [shape = 's32[1]{0}', space=sflag, size = 0x4, scoped, tag = 'scoped memory for tpu_custom_call.1']
    #allocation6 [shape = 's32[1]{0}', space=sflag, size = 0x4, scoped, tag = 'scoped memory for tpu_custom_call.1']
    #allocation7 [shape = 'u8[512]{0}', space=smem, size = 0x200, scoped, tag = 'input window, operand 1, single buffered']
    #allocation8 [shape = 'u8[12288]{0}', space=vmem, size = 0x3000, scoped, tag = 'input window, operand 2, single buffered']
    #allocation9 [shape = 'u8[12288]{0}', space=vmem, size = 0x3000, scoped, tag = 'input window, operand 3, single buffered']
    #allocation10 [shape = 's32[1]{0}', space=sflag, size = 0x4, scoped, tag = 'scoped memory for tpu_custom_call.1']
    #allocation11 [shape = 'u8[28672]{0}', space=vmem, size = 0x7000, scoped, tag = 'output window, operand 0, single buffered']
    #allocation12 [shape = 'u8[28672]{0}', space=vmem, size = 0x7000, scoped, tag = 'output window, operand 1, single buffered']
    #allocation13 [shape = 's32[1]{0}', space=sflag, size = 0x4, scoped, tag = 'scoped memory for tpu_custom_call.1']
    %11 = vsyncpa [#allocation5], 0
    %12 = vsyncpa [#allocation6], 0
    %13 = vsyncpa [#allocation3], 0
    %14 = vsyncpa [#allocation10], 0
    %15 = vsyncpa [#allocation4], 0
    %16 = vsyncpa [#allocation13], 0
    // Predicated region
    $region2: #{tpu_custom_call.1} parent=1 // pred_check
      _
    $region3: #{tpu_custom_call.1} parent=1 // pred_check_branch
      %18 = sbr.rel (0) target = $region5
    $region4: #{tpu_custom_call.1} parent=1 // pred_region
      %s20 = ssub.s32 16, 16
      %21 = vsyncadd [#allocation5], %s20
      %24 = dma.hbm_to_smem %s0, 16, [#allocation2], [#allocation5]
    $region5: #{tpu_custom_call.1} parent=1 // pred_fallthru
      _
    // Predicated region
    $region6: #{tpu_custom_call.1} parent=1 // pred_check
      _
    $region7: #{tpu_custom_call.1} parent=1 // pred_check_branch
      %26 = sbr.rel (0) target = $region9
    $region8: #{tpu_custom_call.1} parent=1 // pred_region
      %s28 = ssub.s32 16, 16
      %29 = vsyncadd [#allocation6], %s28
      %s31 = sshll.u32 %s1, 4
      %s32 = int_to_ptr.vmem [resolvable:$true] %s31
      %34 = dma.vmem_to_smem %s32, 16, [#allocation7], [#allocation6]
    $region9: #{tpu_custom_call.1} parent=1 // pred_fallthru
      _
    // Predicated region
    $region10: #{tpu_custom_call.1} parent=1 // pred_check
      _
    $region11: #{tpu_custom_call.1} parent=1 // pred_check_branch
      %36 = sbr.rel (0) target = $region13
    $region12: #{tpu_custom_call.1} parent=1 // pred_region
      %s38 = ssub.s32 384, 384
      %39 = vsyncadd [#allocation3], %s38
      %s40 = sshll.u32 [#allocation8], 4
      %s41 = int_to_ptr.vmem [resolvable:$true] %s40
      %46 = dma.hbm_to_vmem [thread:$0]  %s2, 384, %s41, [#allocation3], 128, 128, 8
    $region13: #{tpu_custom_call.1} parent=1 // pred_fallthru
      _
    // Predicated region
    $region14: #{tpu_custom_call.1} parent=1 // pred_check
      _
    $region15: #{tpu_custom_call.1} parent=1 // pred_check_branch
      %48 = sbr.rel (0) target = $region17
    $region16: #{tpu_custom_call.1} parent=1 // pred_region
      %s50 = ssub.s32 384, 384
      %51 = vsyncadd [#allocation10], %s50
      %s52 = sshll.u32 [#allocation9], 4
      %s53 = int_to_ptr.vmem [resolvable:$true] %s52
      %58 = dma.hbm_to_vmem [thread:$0]  %s3, 384, %s53, [#allocation10], 128, 128, 8
    $region17: #{tpu_custom_call.1} parent=1 // pred_fallthru
      _
    // Predicated region
    $region18: #{tpu_custom_call.1} parent=1 // pred_check
      _
    $region19: #{tpu_custom_call.1} parent=1 // pred_check_branch
      %60 = sbr.rel (0) target = $region21
    $region20: #{tpu_custom_call.1} parent=1 // pred_region
      %61 = dma.done [#allocation5], 16
    $region21: #{tpu_custom_call.1} parent=1 // pred_fallthru
      _
    // Predicated region
    $region22: #{tpu_custom_call.1} parent=1 // pred_check
      _
    $region23: #{tpu_custom_call.1} parent=1 // pred_check_branch
      %63 = sbr.rel (0) target = $region25
    $region24: #{tpu_custom_call.1} parent=1 // pred_region
      %64 = dma.done [#allocation6], 16
    $region25: #{tpu_custom_call.1} parent=1 // pred_fallthru
      _
    // Predicated region
    $region26: #{tpu_custom_call.1} parent=1 // pred_check
      _
    $region27: #{tpu_custom_call.1} parent=1 // pred_check_branch
      %66 = sbr.rel (0) target = $region29
    $region28: #{tpu_custom_call.1} parent=1 // pred_region
      %67 = dma.done [#allocation3], 384
    $region29: #{tpu_custom_call.1} parent=1 // pred_fallthru
      _
    // Predicated region
    $region30: #{tpu_custom_call.1} parent=1 // pred_check
      _
    $region31: #{tpu_custom_call.1} parent=1 // pred_check_branch
      %69 = sbr.rel (0) target = $region33
    $region32: #{tpu_custom_call.1} parent=1 // pred_region
      %70 = dma.done [#allocation10], 384
    $region33: #{tpu_custom_call.1} parent=1 // pred_fallthru
      _
    %71 = sfence
    %v72 = vld [vmem:[#allocation9] sm:$0xff]
    %v73 = vmul.f32 %v72, 1.442695
    %v74 = vpow.pop %v73
    %v75 = vadd.f32 %v74, 1e-08
    %v76 = vadd.f32 %v75, 1e-08
    %v77 = vrcp.pop %v76
    %v78 = vld [vmem:[#allocation8] sm:$0xff]
    %v79 = vmul.f32 %v78, %v77
    %s80 = scalar_lea.vmem [#allocation9], 8
    %v81 = vld [vmem:[%s80] sm:$0xff]
    %v82 = vmul.f32 %v81, 1.442695
    %v83 = vpow.pop %v82
    %v84 = vadd.f32 %v83, 1e-08
    %v85 = vadd.f32 %v84, 1e-08
    %v86 = vrcp.pop %v85
    %s87 = scalar_lea.vmem [#allocation8], 8
    %v88 = vld [vmem:[%s87] sm:$0xff]
    %v89 = vmul.f32 %v88, %v86
    %s90 = scalar_lea.vmem [#allocation9], 16
    %v91 = vld [vmem:[%s90] sm:$0xff]
    %v92 = vmul.f32 %v91, 1.442695
    %v93 = vpow.pop %v92
    %v94 = vadd.f32 %v93, 1e-08
    %v95 = vadd.f32 %v94, 1e-08
    %v96 = vrcp.pop %v95
    %s97 = scalar_lea.vmem [#allocation8], 16
    %v98 = vld [vmem:[%s97] sm:$0xff]
    %v99 = vmul.f32 %v98, %v96
    %s100 = sld [smem:[#allocation2]]
    %s101 = sld [smem:[#allocation7]]
    %v102 = vstv %s100
    %v103 = vmul.f32 %v102, %v77
    %v104 = vstv %s101
    %v105 = vadd.f32 %v104, %v103
    %v106 = vmul.f32 %v102, %v79
    %s107 = sld [smem:[#allocation2 + $0x1]]
    %v108 = vstv %s107
    %v109 = vmul.f32 %v108, %v86
    %v110 = vadd.f32 %v105, %v109
    %v111 = vmul.f32 %v108, %v89
    %v112 = vadd.f32 %v106, %v111
    %s113 = sld [smem:[#allocation2 + $0x2]]
    %v114 = vstv %s113
    %v115 = vmul.f32 %v114, %v96
    %v116 = vadd.f32 %v110, %v115
    %v117 = vmul.f32 %v114, %v99
    %v118 = vadd.f32 %v112, %v117
    %v119 = vrcp.pop %v116
    %v120 = vmul.f32 %v118, %v119
    %121 = vst [vmem:[#allocation11] sm:$0xff] %v120
    %v122 = vadd.f32 %v119, 1e-08
    %v123 = vlog2.pop %v122
    %v124 = vmul.f32 %v123, 0.6931472
    %125 = vst [vmem:[#allocation12] sm:$0xff] %v124
    %s126 = sld [smem:[#allocation2 + $0x3]]
    %s127 = sld [smem:[#allocation7 + $0x1]]
    %v128 = vstv %s126
    %v129 = vmul.f32 %v128, %v77
    %v130 = vstv %s127
    %v131 = vadd.f32 %v130, %v129
    %v132 = vmul.f32 %v128, %v79
    %s133 = sld [smem:[#allocation2 + $0x4]]
    %v134 = vstv %s133
    %v135 = vmul.f32 %v134, %v86
    %v136 = vadd.f32 %v131, %v135
    %v137 = vmul.f32 %v134, %v89
    %v138 = vadd.f32 %v132, %v137
    %s139 = sld [smem:[#allocation2 + $0x5]]
    %v140 = vstv %s139
    %v141 = vmul.f32 %v140, %v96
    %v142 = vadd.f32 %v136, %v141
    %v143 = vmul.f32 %v140, %v99
    %v144 = vadd.f32 %v138, %v143
    %v145 = vrcp.pop %v142
    %v146 = vmul.f32 %v144, %v145
    %s147 = scalar_lea.vmem [#allocation11], 8
    %148 = vst [vmem:[%s147] sm:$0xff] %v146
    %v149 = vadd.f32 %v145, 1e-08
    %v150 = vlog2.pop %v149
    %v151 = vmul.f32 %v150, 0.6931472
    %s152 = scalar_lea.vmem [#allocation12], 8
    %153 = vst [vmem:[%s152] sm:$0xff] %v151
    %s154 = sld [smem:[#allocation2 + $0x6]]
    %s155 = sld [smem:[#allocation7 + $0x2]]
    %v156 = vstv %s154
    %v157 = vmul.f32 %v156, %v77
    %v158 = vstv %s155
    %v159 = vadd.f32 %v158, %v157
    %v160 = vmul.f32 %v156, %v79
    %s161 = sld [smem:[#allocation2 + $0x7]]
    %v162 = vstv %s161
    %v163 = vmul.f32 %v162, %v86
    %v164 = vadd.f32 %v159, %v163
    %v165 = vmul.f32 %v162, %v89
    %v166 = vadd.f32 %v160, %v165
    %s167 = sld [smem:[#allocation2 + $0x8]]
    %v168 = vstv %s167
    %v169 = vmul.f32 %v168, %v96
    %v170 = vadd.f32 %v164, %v169
    %v171 = vmul.f32 %v168, %v99
    %v172 = vadd.f32 %v166, %v171
    %v173 = vrcp.pop %v170
    %v174 = vmul.f32 %v172, %v173
    %s175 = scalar_lea.vmem [#allocation11], 16
    %176 = vst [vmem:[%s175] sm:$0xff] %v174
    %v177 = vadd.f32 %v173, 1e-08
    %v178 = vlog2.pop %v177
    %v179 = vmul.f32 %v178, 0.6931472
    %s180 = scalar_lea.vmem [#allocation12], 16
    %181 = vst [vmem:[%s180] sm:$0xff] %v179
    %s182 = sld [smem:[#allocation2 + $0x9]]
    %s183 = sld [smem:[#allocation7 + $0x3]]
    %v184 = vstv %s182
    %v185 = vmul.f32 %v184, %v77
    %v186 = vstv %s183
    %v187 = vadd.f32 %v186, %v185
    %v188 = vmul.f32 %v184, %v79
    %s189 = sld [smem:[#allocation2 + $0xa]]
    %v190 = vstv %s189
    %v191 = vmul.f32 %v190, %v86
    %v192 = vadd.f32 %v187, %v191
    %v193 = vmul.f32 %v190, %v89
    %v194 = vadd.f32 %v188, %v193
    %s195 = sld [smem:[#allocation2 + $0xb]]
    %v196 = vstv %s195
    %v197 = vmul.f32 %v196, %v96
    %v198 = vadd.f32 %v192, %v197
    %v199 = vmul.f32 %v196, %v99
    %v200 = vadd.f32 %v194, %v199
    %v201 = vrcp.pop %v198
    %v202 = vmul.f32 %v200, %v201
    %s203 = scalar_lea.vmem [#allocation11], 24
    %204 = vst [vmem:[%s203] sm:$0xff] %v202
    %v205 = vadd.f32 %v201, 1e-08
    %v206 = vlog2.pop %v205
    %v207 = vmul.f32 %v206, 0.6931472
    %s208 = scalar_lea.vmem [#allocation12], 24
    %209 = vst [vmem:[%s208] sm:$0xff] %v207
    %s210 = sld [smem:[#allocation2 + $0xc]]
    %s211 = sld [smem:[#allocation7 + $0x4]]
    %v212 = vstv %s210
    %v213 = vmul.f32 %v212, %v77
    %v214 = vstv %s211
    %v215 = vadd.f32 %v214, %v213
    %v216 = vmul.f32 %v212, %v79
    %s217 = sld [smem:[#allocation2 + $0xd]]
    %v218 = vstv %s217
    %v219 = vmul.f32 %v218, %v86
    %v220 = vadd.f32 %v215, %v219
    %v221 = vmul.f32 %v218, %v89
    %v222 = vadd.f32 %v216, %v221
    %s223 = sld [smem:[#allocation2 + $0xe]]
    %v224 = vstv %s223
    %v225 = vmul.f32 %v224, %v96
    %v226 = vadd.f32 %v220, %v225
    %v227 = vmul.f32 %v224, %v99
    %v228 = vadd.f32 %v222, %v227
    %v229 = vrcp.pop %v226
    %v230 = vmul.f32 %v228, %v229
    %s231 = scalar_lea.vmem [#allocation11], 32
    %232 = vst [vmem:[%s231] sm:$0xff] %v230
    %v233 = vadd.f32 %v229, 1e-08
    %v234 = vlog2.pop %v233
    %v235 = vmul.f32 %v234, 0.6931472
    %s236 = scalar_lea.vmem [#allocation12], 32
    %237 = vst [vmem:[%s236] sm:$0xff] %v235
    %s238 = sld [smem:[#allocation2 + $0xf]]
    %s239 = sld [smem:[#allocation7 + $0x5]]
    %v240 = vstv %s238
    %v241 = vmul.f32 %v240, %v77
    %v242 = vstv %s239
    %v243 = vadd.f32 %v242, %v241
    %v244 = vmul.f32 %v240, %v79
    %s245 = sld [smem:[#allocation2 + $0x10]]
    %v246 = vstv %s245
    %v247 = vmul.f32 %v246, %v86
    %v248 = vadd.f32 %v243, %v247
    %v249 = vmul.f32 %v246, %v89
    %v250 = vadd.f32 %v244, %v249
    %s251 = sld [smem:[#allocation2 + $0x11]]
    %v252 = vstv %s251
    %v253 = vmul.f32 %v252, %v96
    %v254 = vadd.f32 %v248, %v253
    %v255 = vmul.f32 %v252, %v99
    %v256 = vadd.f32 %v250, %v255
    %v257 = vrcp.pop %v254
    %v258 = vmul.f32 %v256, %v257
    %s259 = scalar_lea.vmem [#allocation11], 40
    %260 = vst [vmem:[%s259] sm:$0xff] %v258
    %v261 = vadd.f32 %v257, 1e-08
    %v262 = vlog2.pop %v261
    %v263 = vmul.f32 %v262, 0.6931472
    %s264 = scalar_lea.vmem [#allocation12], 40
    %265 = vst [vmem:[%s264] sm:$0xff] %v263
    %s266 = sld [smem:[#allocation2 + $0x12]]
    %s267 = sld [smem:[#allocation7 + $0x6]]
    %v268 = vstv %s266
    %v269 = vmul.f32 %v268, %v77
    %v270 = vstv %s267
    %v271 = vadd.f32 %v270, %v269
    %v272 = vmul.f32 %v268, %v79
    %s273 = sld [smem:[#allocation2 + $0x13]]
    %v274 = vstv %s273
    %v275 = vmul.f32 %v274, %v86
    %v276 = vadd.f32 %v271, %v275
    %v277 = vmul.f32 %v274, %v89
    %v278 = vadd.f32 %v272, %v277
    %s279 = sld [smem:[#allocation2 + $0x14]]
    %v280 = vstv %s279
    %v281 = vmul.f32 %v280, %v96
    %v282 = vadd.f32 %v276, %v281
    %v283 = vmul.f32 %v280, %v99
    %v284 = vadd.f32 %v278, %v283
    %v285 = vrcp.pop %v282
    %v286 = vmul.f32 %v284, %v285
    %s287 = scalar_lea.vmem [#allocation11], 48
    %288 = vst [vmem:[%s287] sm:$0xff] %v286
    %v289 = vadd.f32 %v285, 1e-08
    %v290 = vlog2.pop %v289
    %v291 = vmul.f32 %v290, 0.6931472
    %s292 = scalar_lea.vmem [#allocation12], 48
    %293 = vst [vmem:[%s292] sm:$0xff] %v291
    // Predicated region
    $region34: #{tpu_custom_call.1} parent=1 // pred_check
      _
    $region35: #{tpu_custom_call.1} parent=1 // pred_check_branch
      %295 = sbr.rel (0) target = $region37
    $region36: #{tpu_custom_call.1} parent=1 // pred_region
      %s297 = ssub.s32 896, 896
      %298 = vsyncadd [#allocation4], %s297
      %s299 = sshll.u32 [#allocation11], 4
      %s300 = int_to_ptr.vmem [resolvable:$true] %s299
      %305 = dma.vmem_to_hbm [thread:$0]  %s300, 896, %s4, [#allocation4], 128, 128, 8
    $region37: #{tpu_custom_call.1} parent=1 // pred_fallthru
      _
    // Predicated region
    $region38: #{tpu_custom_call.1} parent=1 // pred_check
      _
    $region39: #{tpu_custom_call.1} parent=1 // pred_check_branch
      %307 = sbr.rel (0) target = $region41
    $region40: #{tpu_custom_call.1} parent=1 // pred_region
      %s309 = ssub.s32 896, 896
      %310 = vsyncadd [#allocation13], %s309
      %s311 = sshll.u32 [#allocation12], 4
      %s312 = int_to_ptr.vmem [resolvable:$true] %s311
      %317 = dma.vmem_to_hbm [thread:$0]  %s312, 896, %s5, [#allocation13], 128, 128, 8
    $region41: #{tpu_custom_call.1} parent=1 // pred_fallthru
      _
    // Predicated region
    $region42: #{tpu_custom_call.1} parent=1 // pred_check
      _
    $region43: #{tpu_custom_call.1} parent=1 // pred_check_branch
      %319 = sbr.rel (0) target = $region45
    $region44: #{tpu_custom_call.1} parent=1 // pred_region
      %320 = dma.done [#allocation4], 896
    $region45: #{tpu_custom_call.1} parent=1 // pred_fallthru
      _
    // Predicated region
    $region46: #{tpu_custom_call.1} parent=1 // pred_check
      _
    $region47: #{tpu_custom_call.1} parent=1 // pred_check_branch
      %322 = sbr.rel (0) target = $region49
    $region48: #{tpu_custom_call.1} parent=1 // pred_region
      %323 = dma.done [#allocation13], 896
    $region49: #{tpu_custom_call.1} parent=1 // pred_fallthru
      _
    %324 = vsyncpa [#allocation3], 1
    %325 = vsyncpa [#allocation10], 1
    %326 = vsyncpa [#allocation4], 1
    %327 = vsyncpa [#allocation13], 1
    %328 = vsyncpa [#allocation5], 1
    %329 = vsyncpa [#allocation6], 1

</llo_original>
